<compile_context>
chip_gen: v7x
topology: tpu7x:2x2x1
jax: 0.10.0
libtpu: 0.0.40
codegen_flags: <defaults>
</compile_context>

<pallas_src>
import functools

import jax
import jax.numpy as jnp
from jax.experimental import pallas as pl
from jax.experimental.pallas import tpu as pltpu


def _round_up(n, m):
    return ((n + m - 1) // m) * m


# ----------------------------------------------------------------------------
# Kernels
# ----------------------------------------------------------------------------
def input_proj_kernel(xe_ref, w_ref, b_ref, out_ref):
    """One row-tile of the time-independent projection: g_x = [x|e] @ W_xe + b."""
    acc = jnp.dot(xe_ref[...], w_ref[...], preferred_element_type=jnp.float32)
    out_ref[...] = acc + b_ref[...]           # bias added in f32 post-matmul


def recurrent_kernel(gx_ref, h0_ref, wh_ref, hseq_ref, h_scratch, *, hp):
    """One time step of the GRU recurrence. Grid axis 0 = time ("arbitrary").

    gx   : (1, B, 3*hp)  f32  precomputed input-side pre-activations (streamed)
    h0   : (B, hp)       f32  initial hidden state (resident, read at t == 0)
    wh   : (hp, 3*hp)    f32  [w_hr | w_hz | w_hn]   (resident in VMEM)
    hseq : (1, B, hp)    f32  hidden state written for this step
    h_scratch : VMEM (B, hp) f32 carry across grid steps
    """
    t = pl.program_id(0)

    @pl.when(t == 0)
    def _():
        h_scratch[...] = h0_ref[...]

    h = h_scratch[...]                                   # (B, hp), f32
    gx = gx_ref[0]                                       # (B, 3*hp)
    gh = jnp.dot(h, wh_ref[...], preferred_element_type=jnp.float32)

    r = jax.nn.sigmoid(gx[:, 0 * hp:1 * hp] + gh[:, 0 * hp:1 * hp])
    z = jax.nn.sigmoid(gx[:, 1 * hp:2 * hp] + gh[:, 1 * hp:2 * hp])
    n = jnp.tanh(gx[:, 2 * hp:3 * hp] + r * gh[:, 2 * hp:3 * hp])

    h_new = n + z * (h - n)                              # == (1-z)*n + z*h
    h_scratch[...] = h_new
    hseq_ref[0] = h_new.astype(hseq_ref.dtype)


# ----------------------------------------------------------------------------
# Weight packing
# ----------------------------------------------------------------------------
def pack_weights(p, input_size, hidden_size, extra_input_size, *,
                 input_dtype=jnp.float32):
    """Pack the 6 Linear weights + 3 biases into the cuDNN-style split layout."""
    H = hidden_size
    hp = _round_up(H, 128)
    assert H <= hp
    kxe = input_size + extra_input_size
    kxe_p = _round_up(max(kxe, 1), 128)

    xs = slice(0, input_size)
    es = slice(input_size, input_size + extra_input_size)

    # Time-independent half: columns [r | z | n], each hp wide.
    w_xe = jnp.zeros((kxe_p, 3 * hp), jnp.float32)
    w_xe = w_xe.at[xs, 0:H].set(p["w_ir"])
    w_xe = w_xe.at[es, 0:H].set(p["w_er"])
    w_xe = w_xe.at[xs, hp:hp + H].set(p["w_iz"])
    w_xe = w_xe.at[xs, 2 * hp:2 * hp + H].set(p["w_in"])

    b_xe = jnp.zeros((1, 3 * hp), jnp.float32)
    b_xe = b_xe.at[:, 0:H].set(p["b_ir"])
    b_xe = b_xe.at[:, hp:hp + H].set(p["b_iz"])
    b_xe = b_xe.at[:, 2 * hp:2 * hp + H].set(p["b_in"])

    # Recurrent half (always f32): columns [w_hr | w_hz | w_hn].
    w_h = jnp.zeros((hp, 3 * hp), jnp.float32)
    w_h = w_h.at[0:H, 0:H].set(p["w_hr"])
    w_h = w_h.at[0:H, hp:hp + H].set(p["w_hz"])
    w_h = w_h.at[0:H, 2 * hp:2 * hp + H].set(p["w_hn"])

    return {
        "w_xe": w_xe.astype(input_dtype),
        "b_xe": b_xe,
        "w_h": w_h,
        "hp": hp,
        "kxe_pad": kxe_p,
        "hidden_size": H,
        "input_size": input_size,
        "extra_input_size": extra_input_size,
    }


# ----------------------------------------------------------------------------
# Wrappers
# ----------------------------------------------------------------------------
def forget_gru_sequence(x_seq, e_seq, h0, weights):
    """Run the ForgetGRUCell over a sequence.

    x_seq: (T, B, input_size), e_seq: (T, B, extra_input_size), h0: (B, H)
    returns the hidden state after every step: (T, B, H).
    """
    T, B, _ = x_seq.shape
    H = weights["hidden_size"]
    hp = weights["hp"]
    kxe_p = weights["kxe_pad"]
    kxe = weights["input_size"] + weights["extra_input_size"]
    in_dtype = weights["w_xe"].dtype

    # ---- Phase 1: time-independent projections for the whole sequence ------
    xe = jnp.concatenate([x_seq, e_seq], axis=-1).astype(in_dtype)   # (T,B,kxe)
    xe = jnp.pad(xe, ((0, 0), (0, 0), (0, kxe_p - kxe)))
    TB = T * B
    tm = min(256, _round_up(TB, 8))
    mp = _round_up(TB, tm)
    xe_flat = xe.reshape(TB, kxe_p)
    if mp != TB:
        xe_flat = jnp.pad(xe_flat, ((0, mp - TB), (0, 0)))

    gx_flat = pl.pallas_call(
        input_proj_kernel,
        out_shape=jax.ShapeDtypeStruct((mp, 3 * hp), jnp.float32),
        grid_spec=pltpu.PrefetchScalarGridSpec(
            num_scalar_prefetch=0,
            grid=(mp // tm,),
            in_specs=[
                pl.BlockSpec((tm, kxe_p), lambda i: (i, 0)),
                pl.BlockSpec((kxe_p, 3 * hp), lambda i: (0, 0)),   # resident
                pl.BlockSpec((1, 3 * hp), lambda i: (0, 0)),       # resident
            ],
            out_specs=pl.BlockSpec((tm, 3 * hp), lambda i: (i, 0)),
        ),
        compiler_params=pltpu.CompilerParams(
            dimension_semantics=("parallel",)),
    )(xe_flat, weights["w_xe"], weights["b_xe"])

    gx = gx_flat[:TB].reshape(T, B, 3 * hp)

    # ---- Phase 2: sequential recurrence, time loop inside the grid ---------
    # TODO(synk): if many independent sequences exist, stack them into B
    # (M up to 128 on v5e / 256 on v6e,v7x) and add a leading "parallel"
    # batch grid axis so v7x's two TensorCores both get work.
    h0_pad = jnp.pad(h0.astype(jnp.float32), ((0, 0), (0, hp - H)))

    hseq_pad = pl.pallas_call(
        functools.partial(recurrent_kernel, hp=hp),
        out_shape=jax.ShapeDtypeStruct((T, B, hp), jnp.float32),
        grid_spec=pltpu.PrefetchScalarGridSpec(
            num_scalar_prefetch=0,
            grid=(T,),
            in_specs=[
                pl.BlockSpec((1, B, 3 * hp), lambda t: (t, 0, 0)),  # streamed
                pl.BlockSpec((B, hp), lambda t: (0, 0)),            # resident
                pl.BlockSpec((hp, 3 * hp), lambda t: (0, 0)),       # resident
            ],
            out_specs=pl.BlockSpec((1, B, hp), lambda t: (t, 0, 0)),
            scratch_shapes=[pltpu.VMEM((B, hp), jnp.float32)],       # h carry
        ),
        compiler_params=pltpu.CompilerParams(
            dimension_semantics=("arbitrary",)),
    )(gx, h0_pad, weights["w_h"])

    return hseq_pad[:, :, :H]


def forget_gru_cell(x, h, extra_input, weights):
    """Single ForgetGRUCell step (matches the PyTorch module's forward)."""
    hseq = forget_gru_sequence(x[None], extra_input[None], h, weights)
    return hseq[0]


# ----------------------------------------------------------------------------
# Reference + synthetic init
# ----------------------------------------------------------------------------
def init_params(key, input_size, hidden_size, extra_input_size):
    """Deterministic synthetic init (PyTorch Linear shapes, stored transposed)."""
    ks = jax.random.split(key, 10)

    def lin_w(k, in_f):  # stored as (in_f, hidden) == W.T of PyTorch's (hidden, in_f)
        bound = 1.0 / jnp.sqrt(in_f)
        return jax.random.uniform(k, (in_f, hidden_size), jnp.float32, -bound, bound)

    def lin_b(k, in_f):
        bound = 1.0 / jnp.sqrt(in_f)
        return jax.random.uniform(k, (1, hidden_size), jnp.float32, -bound, bound)

    return {
        "w_ir": lin_w(ks[0], input_size), "b_ir": lin_b(ks[1], input_size),
        "w_hr": lin_w(ks[2], hidden_size),
        "w_iz": lin_w(ks[3], input_size), "b_iz": lin_b(ks[4], input_size),
        "w_hz": lin_w(ks[5], hidden_size),
        "w_in": lin_w(ks[6], input_size), "b_in": lin_b(ks[7], input_size),
        "w_hn": lin_w(ks[8], hidden_size),
        "w_er": lin_w(ks[9], extra_input_size),
    }


def forget_gru_cell_ref(x, h, e, p):
    """Pure-JAX reference (mirrors the PyTorch forward)."""
    r = jax.nn.sigmoid(x @ p["w_ir"] + p["b_ir"] + h @ p["w_hr"] + e @ p["w_er"])
    z = jax.nn.sigmoid(x @ p["w_iz"] + p["b_iz"] + h @ p["w_hz"])
    n = jnp.tanh(x @ p["w_in"] + p["b_in"] + r * (h @ p["w_hn"]))
    return (1.0 - z) * n + z * h


def forget_gru_sequence_ref(x_seq, e_seq, h0, p):
    def step(h, xe):
        x, e = xe
        h_new = forget_gru_cell_ref(x, h, e, p)
        return h_new, h_new

    _, hs = jax.lax.scan(step, h0, (x_seq, e_seq))
    return hs


# ----------------------------------------------------------------------------
# Demo / checks
# ----------------------------------------------------------------------------
if __name__ == "__main__":
    B, input_size, hidden_size, extra_input_size, T = 8, 16, 32, 8, 8

    key = jax.random.PRNGKey(0)
    k_x, k_h, k_e, k_p, k_xs, k_es = jax.random.split(key, 6)
    params = init_params(k_p, input_size, hidden_size, extra_input_size)

    x = jax.random.normal(k_x, (B, input_size), jnp.float32)
    h = jax.random.normal(k_h, (B, hidden_size), jnp.float32)
    e = jax.random.normal(k_e, (B, extra_input_size), jnp.float32)

    # ---- float32 path: single step (== PyTorch ForgetGRUCell.forward) ------
    w_f32 = pack_weights(params, input_size, hidden_size, extra_input_size,
                         input_dtype=jnp.float32)
    out = jax.block_until_ready(forget_gru_cell(x, h, e, w_f32))
    ref = forget_gru_cell_ref(x, h, e, params)
    assert out.shape == (B, hidden_size)
    assert jnp.allclose(out, ref, atol=1e-4, rtol=1e-4), \
        float(jnp.max(jnp.abs(out - ref)))

    # ---- float32 path: full sequence (time loop inside the kernel grid) ----
    x_seq = jax.random.normal(k_xs, (T, B, input_size), jnp.float32)
    e_seq = jax.random.normal(k_es, (T, B, extra_input_size), jnp.float32)
    hseq = jax.block_until_ready(forget_gru_sequence(x_seq, e_seq, h, w_f32))
    hseq_ref = forget_gru_sequence_ref(x_seq, e_seq, h, params)
    assert hseq.shape == (T, B, hidden_size)
    assert jnp.allclose(hseq, hseq_ref, atol=1e-4, rtol=1e-4), \
        float(jnp.max(jnp.abs(hseq - hseq_ref)))

    # ---- bf16 input-projection path (recurrent h path stays f32; fine on
    #      v5e/v6e/v7x — bf16 is a native MXU input dtype on all of them) ----
    w_bf16 = pack_weights(params, input_size, hidden_size, extra_input_size,
                          input_dtype=jnp.bfloat16)
    hseq_bf16 = jax.block_until_ready(
        forget_gru_sequence(x_seq, e_seq, h, w_bf16))
    assert hseq_bf16.shape == (T, B, hidden_size)
    assert jnp.allclose(hseq_bf16, hseq_ref, atol=5e-2, rtol=5e-2), \
        float(jnp.max(jnp.abs(hseq_bf16 - hseq_ref)))

    print("KERNEL_OK")
</pallas_src>

<mosaic_0001>
module attributes {stable_mosaic.version = 11 : i64} {
  func.func @input_proj_kernel(%arg0: i32, %arg1: memref<8x128xf32, #tpu.memory_space<vmem>>, %arg2: memref<128x384xf32, #tpu.memory_space<vmem>>, %arg3: memref<1x384xf32, #tpu.memory_space<vmem>>, %arg4: memref<8x384xf32, #tpu.memory_space<vmem>>) attributes {dimension_semantics = [#tpu.dimension_semantics<parallel>], iteration_bounds = array<i64: 1>, scalar_prefetch = 0 : i64, scratch_operands = 0 : i64, tpu.core_type = #tpu.core_type<tc>, window_params = [{transform_indices = @transform_0, window_bounds = array<i64: 8, 128>}, {pipeline_mode = #tpu.pipeline_mode<synchronous>, transform_indices = @transform_1, window_bounds = array<i64: 128, 384>}, {pipeline_mode = #tpu.pipeline_mode<synchronous>, transform_indices = @transform_2, window_bounds = array<i64: 1, 384>}, {transform_indices = @transform_3, window_bounds = array<i64: 8, 384>}]} {
    %c0 = arith.constant 0 : index
    %c0_0 = arith.constant 0 : index
    %0 = vector.load %arg1[%c0, %c0_0] : memref<8x128xf32, #tpu.memory_space<vmem>>, vector<8x128xf32>
    %c0_1 = arith.constant 0 : index
    %c0_2 = arith.constant 0 : index
    %1 = vector.load %arg2[%c0_1, %c0_2] : memref<128x384xf32, #tpu.memory_space<vmem>>, vector<128x384xf32>
    %cst = arith.constant dense<0.000000e+00> : vector<8x384xf32>
    %2 = tpu.matmul %0, %1, %cst {dimension_numbers = #tpu.dot_dimension_numbers<[1], [0], [0], [1], [0, 0, 1, 1], [], []>} : vector<8x128xf32>, vector<128x384xf32>, vector<8x384xf32> -> vector<8x384xf32>
    %c0_3 = arith.constant 0 : index
    %c0_4 = arith.constant 0 : index
    %3 = vector.load %arg3[%c0_3, %c0_4] : memref<1x384xf32, #tpu.memory_space<vmem>>, vector<1x384xf32>
    %4 = vector.broadcast %3 : vector<1x384xf32> to vector<8x384xf32>
    %5 = arith.addf %2, %4 : vector<8x384xf32>
    %c0_5 = arith.constant 0 : index
    %c0_6 = arith.constant 0 : index
    %6 = vector.load %arg4[%c0_5, %c0_6] : memref<8x384xf32, #tpu.memory_space<vmem>>, vector<8x384xf32>
    tpu.vector_store %arg4[%c0_5, %c0_6], %5 {strides = array<i32>} : memref<8x384xf32, #tpu.memory_space<vmem>>, vector<8x384xf32>,
    return
  }
  func.func @transform_0(%arg0: i32) -> (i32, i32) {
    %c0_i32 = arith.constant 0 : i32
    %c0_i32_0 = arith.constant 0 : i32
    return %arg0, %c0_i32 : i32, i32
  }
  func.func @transform_1(%arg0: i32) -> (i32, i32) {
    %c0_i32 = arith.constant 0 : i32
    %c0_i32_0 = arith.constant 0 : i32
    %c0_i32_1 = arith.constant 0 : i32
    return %c0_i32, %c0_i32_0 : i32, i32
  }
  func.func @transform_2(%arg0: i32) -> (i32, i32) {
    %c0_i32 = arith.constant 0 : i32
    %c0_i32_0 = arith.constant 0 : i32
    %c0_i32_1 = arith.constant 0 : i32
    return %c0_i32, %c0_i32_0 : i32, i32
  }
  func.func @transform_3(%arg0: i32) -> (i32, i32) {
    %c0_i32 = arith.constant 0 : i32
    %c0_i32_0 = arith.constant 0 : i32
    return %arg0, %c0_i32 : i32, i32
  }
}

</mosaic_0001>

<llo_original>
// kernel: tpu_custom_call.1
$region0: #{tpu_custom_call.1}
  #allocation0 [shape = 'u32[]', space=smem, size = 0x4, offset = 0x4, fixed_abs, tag = 'smem constant byte address 0x4 - core index']
  #allocation1 [shape = 'u32[144,128]{1,0:T(1,128)}', space=vmem, size = 0x12000, scoped, tag = 'internal scratch']
  %s0 = inlined_call_operand.hbm [shape: f32[8,128], index: 0, kind: input, shape index: {}]
  %s1 = inlined_call_operand.hbm [shape: f32[128,384], index: 1, kind: input, shape index: {}]
  %s2 = inlined_call_operand.vmem [shape: f32[1,384], index: 2, kind: input, shape index: {}]
  %s3 = inlined_call_operand.hbm [shape: f32[8,384], index: 3, kind: output, shape index: {}]
  %s4 = sld [smem:[#allocation0]]
  $region30: #{tpu_custom_call.1} parent=0
    _
  %s6 = ssub.s32 1, %s4
  %s7 = scalar_select 0, %s6, %s4
  $region1: #{tpu_custom_call.1} parent=0
    #allocation2 [shape = 'u8[4096]{0}', space=vmem, size = 0x1000, scoped, tag = 'input window, operand 0, single buffered']
    #allocation3 [shape = 's32[1]{0}', space=sflag, size = 0x4, scoped, tag = 'scoped memory for tpu_custom_call.1']
    #allocation4 [shape = 's32[1]{0}', space=sflag, size = 0x4, scoped, tag = 'scoped memory for tpu_custom_call.1']
    #allocation5 [shape = 'u8[196608]{0}', space=vmem, size = 0x30000, scoped, tag = 'input window, operand 1, single buffered']
    #allocation6 [shape = 's32[1]{0}', space=sflag, size = 0x4, scoped, tag = 'scoped memory for tpu_custom_call.1']
    #allocation7 [shape = 'u8[12288]{0}', space=vmem, size = 0x3000, scoped, tag = 'output window, operand 0, single buffered']
    %8 = vsyncpa [#allocation3], 0
    %9 = vsyncpa [#allocation6], 0
    %10 = vsyncpa [#allocation4], 0
    // Predicated region
    $region2: #{tpu_custom_call.1} parent=1 // pred_check
      _
    $region3: #{tpu_custom_call.1} parent=1 // pred_check_branch
      %12 = sbr.rel (0) target = $region5
    $region4: #{tpu_custom_call.1} parent=1 // pred_region
      %s14 = ssub.s32 128, 128
      %15 = vsyncadd [#allocation3], %s14
      %s17 = sshll.u32 [#allocation2], 4
      %s18 = int_to_ptr.vmem [resolvable:$true] %s17
      %20 = dma.hbm_to_vmem [thread:$0]  %s0, 128, %s18, [#allocation3]
    $region5: #{tpu_custom_call.1} parent=1 // pred_fallthru
      _
    // Predicated region
    $region6: #{tpu_custom_call.1} parent=1 // pred_check
      _
    $region7: #{tpu_custom_call.1} parent=1 // pred_check_branch
      %22 = sbr.rel (0) target = $region9
    $region8: #{tpu_custom_call.1} parent=1 // pred_region
      %s24 = ssub.s32 6144, 6144
      %25 = vsyncadd [#allocation6], %s24
      %s26 = sshll.u32 [#allocation5], 4
      %s27 = int_to_ptr.vmem [resolvable:$true] %s26
      %32 = dma.hbm_to_vmem [thread:$0]  %s1, 6144, %s27, [#allocation6], 384, 384, 24
    $region9: #{tpu_custom_call.1} parent=1 // pred_fallthru
      _
    // Predicated region
    $region10: #{tpu_custom_call.1} parent=1 // pred_check
      _
    $region11: #{tpu_custom_call.1} parent=1 // pred_check_branch
      %34 = sbr.rel (0) target = $region13
    $region12: #{tpu_custom_call.1} parent=1 // pred_region
      _
    $region13: #{tpu_custom_call.1} parent=1 // pred_fallthru
      _
    // Predicated region
    $region14: #{tpu_custom_call.1} parent=1 // pred_check
      _
    $region15: #{tpu_custom_call.1} parent=1 // pred_check_branch
      %36 = sbr.rel (0) target = $region17
    $region16: #{tpu_custom_call.1} parent=1 // pred_region
      %37 = dma.done [#allocation3], 128
    $region17: #{tpu_custom_call.1} parent=1 // pred_fallthru
      _
    // Predicated region
    $region18: #{tpu_custom_call.1} parent=1 // pred_check
      _
    $region19: #{tpu_custom_call.1} parent=1 // pred_check_branch
      %39 = sbr.rel (0) target = $region21
    $region20: #{tpu_custom_call.1} parent=1 // pred_region
      %40 = dma.done [#allocation6], 6144
    $region21: #{tpu_custom_call.1} parent=1 // pred_fallthru
      _
    %v41 = vld [vmem:[#allocation2] sm:$0xff]
    %v42 = vld [vmem:[#allocation5] sm:$0xff]
    %v43 = vld [vmem:[#allocation5 + $0x8] sm:$0xff]
    %v44 = vld [vmem:[#allocation5 + $0x10] sm:$0xff]
    %v45 = vld [vmem:[#allocation5 + $0x18] sm:$0xff]
    %v46 = vld [vmem:[#allocation5 + $0x20] sm:$0xff]
    %v47 = vld [vmem:[#allocation5 + $0x28] sm:$0xff]
    %v48 = vld [vmem:[#allocation5 + $0x30] sm:$0xff]
    %v49 = vld [vmem:[#allocation5 + $0x38] sm:$0xff]
    %v50 = vld [vmem:[#allocation5 + $0x40] sm:$0xff]
    %v51 = vld [vmem:[#allocation5 + $0x48] sm:$0xff]
    %v52 = vld [vmem:[#allocation5 + $0x50] sm:$0xff]
    %v53 = vld [vmem:[#allocation5 + $0x58] sm:$0xff]
    %v54 = vld [vmem:[#allocation5 + $0x60] sm:$0xff]
    %v55 = vld [vmem:[#allocation5 + $0x68] sm:$0xff]
    %v56 = vld [vmem:[#allocation5 + $0x70] sm:$0xff]
    %v57 = vld [vmem:[#allocation5 + $0x78] sm:$0xff]
    %v58 = vld [vmem:[#allocation5 + $0x80] sm:$0xff]
    %v59 = vld [vmem:[#allocation5 + $0x88] sm:$0xff]
    %v60 = vld [vmem:[#allocation5 + $0x90] sm:$0xff]
    %v61 = vld [vmem:[#allocation5 + $0x98] sm:$0xff]
    %v62 = vld [vmem:[#allocation5 + $0xa0] sm:$0xff]
    %v63 = vld [vmem:[#allocation5 + $0xa8] sm:$0xff]
    %v64 = vld [vmem:[#allocation5 + $0xb0] sm:$0xff]
    %v65 = vld [vmem:[#allocation5 + $0xb8] sm:$0xff]
    %v66 = vld [vmem:[#allocation5 + $0xc0] sm:$0xff]
    %v67 = vld [vmem:[#allocation5 + $0xc8] sm:$0xff]
    %v68 = vld [vmem:[#allocation5 + $0xd0] sm:$0xff]
    %v69 = vld [vmem:[#allocation5 + $0xd8] sm:$0xff]
    %v70 = vld [vmem:[#allocation5 + $0xe0] sm:$0xff]
    %v71 = vld [vmem:[#allocation5 + $0xe8] sm:$0xff]
    %v72 = vld [vmem:[#allocation5 + $0xf0] sm:$0xff]
    %v73 = vld [vmem:[#allocation5 + $0xf8] sm:$0xff]
    %v74 = vld [vmem:[#allocation5 + $0x100] sm:$0xff]
    %v75 = vld [vmem:[#allocation5 + $0x108] sm:$0xff]
    %v76 = vld [vmem:[#allocation5 + $0x110] sm:$0xff]
    %v77 = vld [vmem:[#allocation5 + $0x118] sm:$0xff]
    %v78 = vld [vmem:[#allocation5 + $0x120] sm:$0xff]
    %v79 = vld [vmem:[#allocation5 + $0x128] sm:$0xff]
    %v80 = vld [vmem:[#allocation5 + $0x130] sm:$0xff]
    %v81 = vld [vmem:[#allocation5 + $0x138] sm:$0xff]
    %v82 = vld [vmem:[#allocation5 + $0x140] sm:$0xff]
    %v83 = vld [vmem:[#allocation5 + $0x148] sm:$0xff]
    %v84 = vld [vmem:[#allocation5 + $0x150] sm:$0xff]
    %v85 = vld [vmem:[#allocation5 + $0x158] sm:$0xff]
    %v86 = vld [vmem:[#allocation5 + $0x160] sm:$0xff]
    %v87 = vld [vmem:[#allocation5 + $0x168] sm:$0xff]
    %v88 = vld [vmem:[#allocation5 + $0x170] sm:$0xff]
    %v89 = vld [vmem:[#allocation5 + $0x178] sm:$0xff]
    %v90 = vld [vmem:[%s2] sm:$0x7]
    %v92 = vlaneseq
    %v93 = vshrl.u32 %v92, 7
    %v94 = vsub.s32 0, %v93
    %v95 = vrot.slane %v90, %v94
    %v96 = vlaneseq
    %v97 = vshrl.u32 %v96, 7
    %v98 = vsub.s32 1, %v97
    %v99 = vrot.slane %v90, %v98
    %v100 = vlaneseq
    %v101 = vshrl.u32 %v100, 7
    %v102 = vsub.s32 2, %v101
    %v103 = vrot.slane %v90, %v102
    %107 = vmatprep.subr.mxu0 %v43
    %108 = vmatpush1.msra.mxu0 %v42
    %109 = vmatprep.subr.mxu0 %v46
    %110 = vmatpush1.msra.mxu0 %v45
    %111 = vmatprep.subr.mxu0 %v49
    %112 = vmatpush1.msra.mxu0 %v48
    %113 = vmatprep.subr.mxu0 %v52
    %114 = vmatpush1.msra.mxu0 %v51
    %115 = vmatprep.subr.mxu0 %v55
    %116 = vmatpush1.msra.mxu0 %v54
    %117 = vmatprep.subr.mxu0 %v58
    %118 = vmatpush1.msra.mxu0 %v57
    %119 = vmatprep.subr.mxu0 %v61
    %120 = vmatpush1.msra.mxu0 %v60
    %121 = vmatprep.subr.mxu0 %v64
    %122 = vmatpush1.msra.mxu0 %v63
    %123 = vmatprep.subr.mxu0 %v67
    %124 = vmatpush1.msra.mxu0 %v66
    %125 = vmatprep.subr.mxu0 %v70
    %126 = vmatpush1.msra.mxu0 %v69
    %127 = vmatprep.subr.mxu0 %v73
    %128 = vmatpush1.msra.mxu0 %v72
    %129 = vmatprep.subr.mxu0 %v76
    %130 = vmatpush1.msra.mxu0 %v75
    %131 = vmatprep.subr.mxu0 %v79
    %132 = vmatpush1.msra.mxu0 %v78
    %133 = vmatprep.subr.mxu0 %v82
    %134 = vmatpush1.msra.mxu0 %v81
    %135 = vmatprep.subr.mxu0 %v85
    %136 = vmatpush1.msra.mxu0 %v84
    %137 = vmatprep.subr.mxu0 %v88
    %138 = vmatpush1.msra.mxu0 %v87
    %139 = vmatprep.subr.mxu0 0.0
    %140 = vmatpush1.msra.mxu0 0.0
    %141 = vmatprep.subr.mxu0 0.0
    %142 = vmatpush1.msra.mxu0 0.0
    %143 = vmatprep.subr.mxu0 0.0
    %144 = vmatpush1.msra.mxu0 0.0
    %145 = vmatprep.subr.mxu0 0.0
    %146 = vmatpush1.msra.mxu0 0.0
    %147 = vmatprep.subr.mxu0 0.0
    %148 = vmatpush1.msra.mxu0 0.0
    %149 = vmatprep.subr.mxu0 0.0
    %150 = vmatpush1.msra.mxu0 0.0
    %151 = vmatprep.subr.mxu0 0.0
    %152 = vmatpush1.msra.mxu0 0.0
    %153 = vmatprep.subr.mxu0 0.0
    %154 = vmatpush1.msra.mxu0 0.0
    %155 = vmatprep.subr.mxu0 0.0
    %156 = vmatpush1.msra.mxu0 0.0
    %157 = vmatprep.subr.mxu0 0.0
    %158 = vmatpush1.msra.mxu0 0.0
    %159 = vmatprep.subr.mxu0 0.0
    %160 = vmatpush1.msra.mxu0 0.0
    %161 = vmatprep.subr.mxu0 0.0
    %162 = vmatpush1.msra.mxu0 0.0
    %163 = vmatprep.subr.mxu0 0.0
    %164 = vmatpush1.msra.mxu0 0.0
    %165 = vmatprep.subr.mxu0 0.0
    %166 = vmatpush1.msra.mxu0 0.0
    %167 = vmatprep.subr.mxu0 0.0
    %168 = vmatpush1.msra.mxu0 0.0
    %169 = vmatprep.subr.mxu0 0.0
    %170 = vmatpush1.msra.mxu0 0.0
    %171 = vmatprep.mubr.f32.mxu0 0.0
    %172 = vmatmul.mubr.f32.gmra.mrb[0].mxu0 %v41
    %v173 = vpop.f32.mrb[0].mxu0
    %v174 = vadd.f32 %v95, %v173
    %v175 = vpop.f32.mrb[0].mxu0
    %v176 = vadd.f32 %v99, %v175
    %177 = vdwg.mxu0
    %178 = vmatprep.subr.mxu0 0.0
    %179 = vmatpush1.msra.mxu0 %v44
    %180 = vmatprep.subr.mxu0 0.0
    %181 = vmatpush1.msra.mxu0 %v47
    %182 = vmatprep.subr.mxu0 0.0
    %183 = vmatpush1.msra.mxu0 %v50
    %184 = vmatprep.subr.mxu0 0.0
    %185 = vmatpush1.msra.mxu0 %v53
    %186 = vmatprep.subr.mxu0 0.0
    %187 = vmatpush1.msra.mxu0 %v56
    %188 = vmatprep.subr.mxu0 0.0
    %189 = vmatpush1.msra.mxu0 %v59
    %190 = vmatprep.subr.mxu0 0.0
    %191 = vmatpush1.msra.mxu0 %v62
    %192 = vmatprep.subr.mxu0 0.0
    %193 = vmatpush1.msra.mxu0 %v65
    %194 = vmatprep.subr.mxu0 0.0
    %195 = vmatpush1.msra.mxu0 %v68
    %196 = vmatprep.subr.mxu0 0.0
    %197 = vmatpush1.msra.mxu0 %v71
    %198 = vmatprep.subr.mxu0 0.0
    %199 = vmatpush1.msra.mxu0 %v74
    %200 = vmatprep.subr.mxu0 0.0
    %201 = vmatpush1.msra.mxu0 %v77
    %202 = vmatprep.subr.mxu0 0.0
    %203 = vmatpush1.msra.mxu0 %v80
    %204 = vmatprep.subr.mxu0 0.0
    %205 = vmatpush1.msra.mxu0 %v83
    %206 = vmatprep.subr.mxu0 0.0
    %207 = vmatpush1.msra.mxu0 %v86
    %208 = vmatprep.subr.mxu0 0.0
    %209 = vmatpush1.msra.mxu0 %v89
    %210 = vmatprep.subr.mxu0 0.0
    %211 = vmatpush1.msra.mxu0 0.0
    %212 = vmatprep.subr.mxu0 0.0
    %213 = vmatpush1.msra.mxu0 0.0
    %214 = vmatprep.subr.mxu0 0.0
    %215 = vmatpush1.msra.mxu0 0.0
    %216 = vmatprep.subr.mxu0 0.0
    %217 = vmatpush1.msra.mxu0 0.0
    %218 = vmatprep.subr.mxu0 0.0
    %219 = vmatpush1.msra.mxu0 0.0
    %220 = vmatprep.subr.mxu0 0.0
    %221 = vmatpush1.msra.mxu0 0.0
    %222 = vmatprep.subr.mxu0 0.0
    %223 = vmatpush1.msra.mxu0 0.0
    %224 = vmatprep.subr.mxu0 0.0
    %225 = vmatpush1.msra.mxu0 0.0
    %226 = vmatprep.subr.mxu0 0.0
    %227 = vmatpush1.msra.mxu0 0.0
    %228 = vmatprep.subr.mxu0 0.0
    %229 = vmatpush1.msra.mxu0 0.0
    %230 = vmatprep.subr.mxu0 0.0
    %231 = vmatpush1.msra.mxu0 0.0
    %232 = vmatprep.subr.mxu0 0.0
    %233 = vmatpush1.msra.mxu0 0.0
    %234 = vmatprep.subr.mxu0 0.0
    %235 = vmatpush1.msra.mxu0 0.0
    %236 = vmatprep.subr.mxu0 0.0
    %237 = vmatpush1.msra.mxu0 0.0
    %238 = vmatprep.subr.mxu0 0.0
    %239 = vmatpush1.msra.mxu0 0.0
    %240 = vmatprep.subr.mxu0 0.0
    %241 = vmatpush1.msra.mxu0 0.0
    %242 = vmatprep.mubr.f32.mxu0 0.0
    %243 = vmatmul.mubr.f32.gmra.mrb[0].mxu0 %v41
    %v244 = vpop.f32.mrb[0].mxu0
    %v245 = vadd.f32 %v103, %v244
    %v246 = vpop.f32.mrb[0].mxu0
    %247 = vdwg.mxu0
    %248 = vst [vmem:[#allocation7] sm:$0xff] %v174
    %249 = vst [vmem:[#allocation7 + $0x8] sm:$0xff] %v176
    %250 = vst [vmem:[#allocation7 + $0x10] sm:$0xff] %v245
    // Predicated region
    $region22: #{tpu_custom_call.1} parent=1 // pred_check
      _
    $region23: #{tpu_custom_call.1} parent=1 // pred_check_branch
      %252 = sbr.rel (0) target = $region25
    $region24: #{tpu_custom_call.1} parent=1 // pred_region
      %s254 = ssub.s32 384, 384
      %255 = vsyncadd [#allocation4], %s254
      %s257 = sshll.u32 [#allocation7], 4
      %s258 = int_to_ptr.vmem [resolvable:$true] %s257
      %260 = dma.vmem_to_hbm [thread:$0]  %s258, 384, %s3, [#allocation4]
    $region25: #{tpu_custom_call.1} parent=1 // pred_fallthru
      _
    // Predicated region
    $region26: #{tpu_custom_call.1} parent=1 // pred_check
      _
    $region27: #{tpu_custom_call.1} parent=1 // pred_check_branch
      %262 = sbr.rel (0) target = $region29
    $region28: #{tpu_custom_call.1} parent=1 // pred_region
      %263 = dma.done [#allocation4], 384
    $region29: #{tpu_custom_call.1} parent=1 // pred_fallthru
      _
    %264 = vsyncpa [#allocation3], 1
    %265 = vsyncpa [#allocation6], 1
    %266 = vsyncpa [#allocation4], 1

</llo_original>
